<compile_context>
chip_gen: v5e
topology: v5e:2x2
jax: 0.10.0
libtpu: 0.0.40
codegen_flags: <defaults>
</compile_context>

<pallas_src>
import functools
import math

import jax
import jax.numpy as jnp
import numpy as np
from jax.experimental import pallas as pl
from jax.experimental.pallas import tpu as pltpu

# Model hyper-parameters (small, consistent with the module's forward).
BATCH = 2
SEQ = 8                 # num_tokens == context_length for this example
D_IN = 32
D_OUT = 32
NUM_HEADS = 4
HEAD_DIM = D_OUT // NUM_HEADS
CONTEXT_LENGTH = 8
DROPOUT = 0.0           # TODO(synk): nn.Dropout treated as inference-mode identity.


def mha_kernel(x_ref, w_ref, o_ref, *, seq, num_heads, head_dim, d_out):
    """One grid step = one batch element: fused QKV projection + causal attention.

    x_ref: (seq, d_in), w_ref: (d_in, 3*d_out), o_ref: (seq, d_out).
    """
    x = x_ref[...]                       # (T, d_in)
    w = w_ref[...]                       # (d_in, 3*d_out)

    # One fused MXU pass for Q, K, V (96-lane result instead of 3x 32-lane).
    qkv = jnp.dot(x, w, preferred_element_type=jnp.float32)   # (T, 3*d_out)

    scale = jnp.float32(1.0 / math.sqrt(head_dim))
    q = qkv[:, 0 * d_out:1 * d_out] * scale    # fold 1/sqrt(hd) into q once
    k = qkv[:, 1 * d_out:2 * d_out]
    v = qkv[:, 2 * d_out:3 * d_out]

    # Causal mask: position j > i is masked (torch.triu(ones, diagonal=1) == 1).
    # Large finite negative instead of -inf keeps exp() NaN-free; identical
    # softmax result here since the diagonal is never masked.
    row = jax.lax.broadcasted_iota(jnp.int32, (seq, seq), 0)
    col = jax.lax.broadcasted_iota(jnp.int32, (seq, seq), 1)
    causal = col > row
    neg_big = jnp.float32(-1e30)

    # Static (unrolled) per-head loop; all slices are static.
    for h in range(num_heads):
        cs = slice(h * head_dim, (h + 1) * head_dim)
        qh = q[:, cs]                                         # (T, hd)
        kh = k[:, cs]
        vh = v[:, cs]

        # q @ k^T without materializing a transpose: contract last dims of both.
        s = jax.lax.dot_general(qh, kh, (((1,), (1,)), ((), ())),
                                preferred_element_type=jnp.float32)   # (T, T)
        s = jnp.where(causal, neg_big, s)

        # Softmax in f32 (mandatory on v5e's no-bf16 VPU/EUP; cheap everywhere).
        m = jnp.max(s, axis=-1, keepdims=True)
        e = jnp.exp(s - m)
        denom = jnp.sum(e, axis=-1, keepdims=True)
        # EUP approx reciprocal + one Newton-Raphson step: off the VALU divide,
        # relative error ~2^-24 (well inside the 1e-5 comparison tolerance).
        r = pl.reciprocal(denom, approx=True)
        r = r * (jnp.float32(2.0) - denom * r)
        p = e * r

        # Write this head's context straight into its lane slice of the output
        # block (masked vst into VMEM; HBM writeback is one DMA per grid step).
        ctx = jnp.dot(p, vh, preferred_element_type=jnp.float32)     # (T, hd)
        o_ref[:, cs] = ctx.astype(o_ref.dtype)


@jax.jit
def multi_head_attention(x, w_q, w_k, w_v):
    b, t, d_in = x.shape
    d_out = w_q.shape[1]
    head_dim = d_out // NUM_HEADS

    # Fuse QKV weights in the wrapper (one tiny concat at the XLA level).
    w_qkv = jnp.concatenate([w_q, w_k, w_v], axis=1)   # (d_in, 3*d_out)

    kernel = functools.partial(
        mha_kernel, seq=t, num_heads=NUM_HEADS, head_dim=head_dim, d_out=d_out)

    out = pl.pallas_call(
        kernel,
        out_shape=jax.ShapeDtypeStruct((b, t, d_out), x.dtype),
        grid_spec=pltpu.PrefetchScalarGridSpec(
            num_scalar_prefetch=0,
            grid=(b,),   # batch grid axis -> both TCs usable on v7x
            in_specs=[
                # Leading batch dim squeezed out of the kernel view.
                pl.BlockSpec((None, t, d_in), lambda i: (i, 0, 0)),
                # Same weight block every step -> stays resident in VMEM.
                pl.BlockSpec((d_in, 3 * d_out), lambda i: (0, 0)),
            ],
            out_specs=pl.BlockSpec((None, t, d_out), lambda i: (i, 0, 0)),
        ),
        compiler_params=pltpu.CompilerParams(
            dimension_semantics=("parallel",),
        ),
    )(x, w_qkv)
    return out


def reference_mha(x, w_q, w_k, w_v):
    """Pure-JAX reference matching the PyTorch forward."""
    b, t, _ = x.shape
    q = x @ w_q
    k = x @ w_k
    v = x @ w_v
    q = q.reshape(b, t, NUM_HEADS, HEAD_DIM).transpose(0, 2, 1, 3)
    k = k.reshape(b, t, NUM_HEADS, HEAD_DIM).transpose(0, 2, 1, 3)
    v = v.reshape(b, t, NUM_HEADS, HEAD_DIM).transpose(0, 2, 1, 3)
    scores = jnp.einsum("bhqd,bhkd->bhqk", q, k)
    mask = jnp.triu(jnp.ones((CONTEXT_LENGTH, CONTEXT_LENGTH)), k=1)[:t, :t]
    scores = jnp.where(mask == 1, -jnp.inf, scores)
    scores = scores / jnp.sqrt(jnp.float32(HEAD_DIM))
    attn = jax.nn.softmax(scores, axis=-1)
    ctx = jnp.einsum("bhqk,bhkd->bhqd", attn, v)
    return ctx.transpose(0, 2, 1, 3).reshape(b, t, D_OUT)


if __name__ == "__main__":
    key = jax.random.PRNGKey(0)
    kx, kq, kk, kv = jax.random.split(key, 4)

    x = jax.random.normal(kx, (BATCH, SEQ, D_IN), dtype=jnp.float32)
    # Deterministic "Linear" weights, stored as (d_in, d_out).
    w_q = jax.random.normal(kq, (D_IN, D_OUT), dtype=jnp.float32) * 0.05
    w_k = jax.random.normal(kk, (D_IN, D_OUT), dtype=jnp.float32) * 0.05
    w_v = jax.random.normal(kv, (D_IN, D_OUT), dtype=jnp.float32) * 0.05

    out = multi_head_attention(x, w_q, w_k, w_v)
    out = jax.block_until_ready(out)

    ref = reference_mha(x, w_q, w_k, w_v)
    np.testing.assert_allclose(np.asarray(out), np.asarray(ref), atol=1e-5, rtol=1e-5)

    print("KERNEL_OK")
</pallas_src>

<mosaic_0001>
module attributes {stable_mosaic.version = 11 : i64} {
  func.func @mha_kernel(%arg0: i32, %arg1: memref<1x8x32xf32, #tpu.memory_space<vmem>>, %arg2: memref<32x96xf32, #tpu.memory_space<vmem>>, %arg3: memref<1x8x32xf32, #tpu.memory_space<vmem>>) attributes {dimension_semantics = [#tpu.dimension_semantics<parallel>], iteration_bounds = array<i64: 2>, scalar_prefetch = 0 : i64, scratch_operands = 0 : i64, tpu.core_type = #tpu.core_type<tc>, window_params = [{transform_indices = @transform_0, window_bounds = array<i64: 1, 8, 32>}, {pipeline_mode = #tpu.pipeline_mode<synchronous>, transform_indices = @transform_1, window_bounds = array<i64: 32, 96>}, {transform_indices = @transform_2, window_bounds = array<i64: 1, 8, 32>}]} {
    %c0 = arith.constant 0 : index
    %c0_0 = arith.constant 0 : index
    %c0_1 = arith.constant 0 : index
    %0 = vector.load %arg1[%c0, %c0_0, %c0_1] : memref<1x8x32xf32, #tpu.memory_space<vmem>>, vector<1x8x32xf32>
    %1 = vector.shape_cast %0 : vector<1x8x32xf32> to vector<8x32xf32>
    %c0_2 = arith.constant 0 : index
    %c0_3 = arith.constant 0 : index
    %2 = vector.load %arg2[%c0_2, %c0_3] : memref<32x96xf32, #tpu.memory_space<vmem>>, vector<32x96xf32>
    %cst = arith.constant dense<0.000000e+00> : vector<8x96xf32>
    %3 = tpu.matmul %1, %2, %cst {dimension_numbers = #tpu.dot_dimension_numbers<[1], [0], [0], [1], [0, 0, 1, 1], [], []>} : vector<8x32xf32>, vector<32x96xf32>, vector<8x96xf32> -> vector<8x96xf32>
    %4 = vector.extract_strided_slice %3 {offsets = [0, 0], sizes = [8, 32], strides = [1, 1]} : vector<8x96xf32> to vector<8x32xf32>
    %cst_4 = arith.constant 0.353553385 : f32
    %5 = vector.broadcast %cst_4 : f32 to vector<8x32xf32>
    %6 = arith.mulf %4, %5 : vector<8x32xf32>
    %7 = vector.extract_strided_slice %3 {offsets = [0, 32], sizes = [8, 32], strides = [1, 1]} : vector<8x96xf32> to vector<8x32xf32>
    %8 = vector.extract_strided_slice %3 {offsets = [0, 64], sizes = [8, 32], strides = [1, 1]} : vector<8x96xf32> to vector<8x32xf32>
    %9 = tpu.iota {dimensions = array<i32: 0>} : vector<8x8xi32>
    %10 = tpu.iota {dimensions = array<i32: 1>} : vector<8x8xi32>
    %11 = arith.cmpi sgt, %10, %9 : vector<8x8xi32>
    %12 = vector.extract_strided_slice %6 {offsets = [0, 0], sizes = [8, 8], strides = [1, 1]} : vector<8x32xf32> to vector<8x8xf32>
    %13 = vector.extract_strided_slice %7 {offsets = [0, 0], sizes = [8, 8], strides = [1, 1]} : vector<8x32xf32> to vector<8x8xf32>
    %14 = vector.extract_strided_slice %8 {offsets = [0, 0], sizes = [8, 8], strides = [1, 1]} : vector<8x32xf32> to vector<8x8xf32>
    %cst_5 = arith.constant dense<0.000000e+00> : vector<8x8xf32>
    %15 = tpu.matmul %12, %13, %cst_5 {dimension_numbers = #tpu.dot_dimension_numbers<[1], [1], [0], [0], [0, 0, 1, 0], [], []>} : vector<8x8xf32>, vector<8x8xf32>, vector<8x8xf32> -> vector<8x8xf32>
    %cst_6 = arith.constant -1.000000e+30 : f32
    %16 = vector.broadcast %cst_6 : f32 to vector<8x8xf32>
    %17 = arith.select %11, %16, %15 : vector<8x8xi1>, vector<8x8xf32>
    %cst_7 = arith.constant dense<0xFF800000> : vector<8xf32>
    %18 = vector.multi_reduction <maximumf>, %17, %cst_7 [1] : vector<8x8xf32> to vector<8xf32>
    %19 = vector.shape_cast %18 : vector<8xf32> to vector<8x1xf32>
    %20 = vector.broadcast %19 : vector<8x1xf32> to vector<8x8xf32>
    %21 = arith.subf %17, %20 : vector<8x8xf32>
    %22 = math.exp %21 : vector<8x8xf32>
    %cst_8 = arith.constant dense<0.000000e+00> : vector<8xf32>
    %23 = vector.multi_reduction <add>, %22, %cst_8 [1] : vector<8x8xf32> to vector<8xf32>
    %24 = vector.shape_cast %23 : vector<8xf32> to vector<8x1xf32>
    %25 = tpu.reciprocal %24 {approx = true} : vector<8x1xf32> -> vector<8x1xf32>
    %26 = arith.mulf %24, %25 : vector<8x1xf32>
    %cst_9 = arith.constant 2.000000e+00 : f32
    %27 = vector.broadcast %cst_9 : f32 to vector<8x1xf32>
    %28 = arith.subf %27, %26 : vector<8x1xf32>
    %29 = arith.mulf %25, %28 : vector<8x1xf32>
    %30 = vector.broadcast %29 : vector<8x1xf32> to vector<8x8xf32>
    %31 = arith.mulf %22, %30 : vector<8x8xf32>
    %cst_10 = arith.constant dense<0.000000e+00> : vector<8x8xf32>
    %32 = tpu.matmul %31, %14, %cst_10 {dimension_numbers = #tpu.dot_dimension_numbers<[1], [0], [0], [1], [0, 0, 1, 1], [], []>} : vector<8x8xf32>, vector<8x8xf32>, vector<8x8xf32> -> vector<8x8xf32>
    %c0_11 = arith.constant 0 : index
    %c0_12 = arith.constant 0 : index
    %c0_13 = arith.constant 0 : index
    %33 = vector.load %arg3[%c0_11, %c0_12, %c0_13] : memref<1x8x32xf32, #tpu.memory_space<vmem>>, vector<1x8x8xf32>
    %34 = vector.shape_cast %33 : vector<1x8x8xf32> to vector<8x8xf32>
    %35 = vector.shape_cast %32 : vector<8x8xf32> to vector<1x8x8xf32>
    tpu.vector_store %arg3[%c0_11, %c0_12, %c0_13], %35 {strides = array<i32>} : memref<1x8x32xf32, #tpu.memory_space<vmem>>, vector<1x8x8xf32>,
    %36 = vector.extract_strided_slice %6 {offsets = [0, 8], sizes = [8, 8], strides = [1, 1]} : vector<8x32xf32> to vector<8x8xf32>
    %37 = vector.extract_strided_slice %7 {offsets = [0, 8], sizes = [8, 8], strides = [1, 1]} : vector<8x32xf32> to vector<8x8xf32>
    %38 = vector.extract_strided_slice %8 {offsets = [0, 8], sizes = [8, 8], strides = [1, 1]} : vector<8x32xf32> to vector<8x8xf32>
    %cst_14 = arith.constant dense<0.000000e+00> : vector<8x8xf32>
    %39 = tpu.matmul %36, %37, %cst_14 {dimension_numbers = #tpu.dot_dimension_numbers<[1], [1], [0], [0], [0, 0, 1, 0], [], []>} : vector<8x8xf32>, vector<8x8xf32>, vector<8x8xf32> -> vector<8x8xf32>
    %cst_15 = arith.constant -1.000000e+30 : f32
    %40 = vector.broadcast %cst_15 : f32 to vector<8x8xf32>
    %41 = arith.select %11, %40, %39 : vector<8x8xi1>, vector<8x8xf32>
    %cst_16 = arith.constant dense<0xFF800000> : vector<8xf32>
    %42 = vector.multi_reduction <maximumf>, %41, %cst_16 [1] : vector<8x8xf32> to vector<8xf32>
    %43 = vector.shape_cast %42 : vector<8xf32> to vector<8x1xf32>
    %44 = vector.broadcast %43 : vector<8x1xf32> to vector<8x8xf32>
    %45 = arith.subf %41, %44 : vector<8x8xf32>
    %46 = math.exp %45 : vector<8x8xf32>
    %cst_17 = arith.constant dense<0.000000e+00> : vector<8xf32>
    %47 = vector.multi_reduction <add>, %46, %cst_17 [1] : vector<8x8xf32> to vector<8xf32>
    %48 = vector.shape_cast %47 : vector<8xf32> to vector<8x1xf32>
    %49 = tpu.reciprocal %48 {approx = true} : vector<8x1xf32> -> vector<8x1xf32>
    %50 = arith.mulf %48, %49 : vector<8x1xf32>
    %cst_18 = arith.constant 2.000000e+00 : f32
    %51 = vector.broadcast %cst_18 : f32 to vector<8x1xf32>
    %52 = arith.subf %51, %50 : vector<8x1xf32>
    %53 = arith.mulf %49, %52 : vector<8x1xf32>
    %54 = vector.broadcast %53 : vector<8x1xf32> to vector<8x8xf32>
    %55 = arith.mulf %46, %54 : vector<8x8xf32>
    %cst_19 = arith.constant dense<0.000000e+00> : vector<8x8xf32>
    %56 = tpu.matmul %55, %38, %cst_19 {dimension_numbers = #tpu.dot_dimension_numbers<[1], [0], [0], [1], [0, 0, 1, 1], [], []>} : vector<8x8xf32>, vector<8x8xf32>, vector<8x8xf32> -> vector<8x8xf32>
    %c0_20 = arith.constant 0 : index
    %c0_21 = arith.constant 0 : index
    %c8 = arith.constant 8 : index
    %57 = vector.load %arg3[%c0_20, %c0_21, %c8] : memref<1x8x32xf32, #tpu.memory_space<vmem>>, vector<1x8x8xf32>
    %58 = vector.shape_cast %57 : vector<1x8x8xf32> to vector<8x8xf32>
    %59 = vector.shape_cast %56 : vector<8x8xf32> to vector<1x8x8xf32>
    tpu.vector_store %arg3[%c0_20, %c0_21, %c8], %59 {strides = array<i32>} : memref<1x8x32xf32, #tpu.memory_space<vmem>>, vector<1x8x8xf32>,
    %60 = vector.extract_strided_slice %6 {offsets = [0, 16], sizes = [8, 8], strides = [1, 1]} : vector<8x32xf32> to vector<8x8xf32>
    %61 = vector.extract_strided_slice %7 {offsets = [0, 16], sizes = [8, 8], strides = [1, 1]} : vector<8x32xf32> to vector<8x8xf32>
    %62 = vector.extract_strided_slice %8 {offsets = [0, 16], sizes = [8, 8], strides = [1, 1]} : vector<8x32xf32> to vector<8x8xf32>
    %cst_22 = arith.constant dense<0.000000e+00> : vector<8x8xf32>
    %63 = tpu.matmul %60, %61, %cst_22 {dimension_numbers = #tpu.dot_dimension_numbers<[1], [1], [0], [0], [0, 0, 1, 0], [], []>} : vector<8x8xf32>, vector<8x8xf32>, vector<8x8xf32> -> vector<8x8xf32>
    %cst_23 = arith.constant -1.000000e+30 : f32
    %64 = vector.broadcast %cst_23 : f32 to vector<8x8xf32>
    %65 = arith.select %11, %64, %63 : vector<8x8xi1>, vector<8x8xf32>
    %cst_24 = arith.constant dense<0xFF800000> : vector<8xf32>
    %66 = vector.multi_reduction <maximumf>, %65, %cst_24 [1] : vector<8x8xf32> to vector<8xf32>
    %67 = vector.shape_cast %66 : vector<8xf32> to vector<8x1xf32>
    %68 = vector.broadcast %67 : vector<8x1xf32> to vector<8x8xf32>
    %69 = arith.subf %65, %68 : vector<8x8xf32>
    %70 = math.exp %69 : vector<8x8xf32>
    %cst_25 = arith.constant dense<0.000000e+00> : vector<8xf32>
    %71 = vector.multi_reduction <add>, %70, %cst_25 [1] : vector<8x8xf32> to vector<8xf32>
    %72 = vector.shape_cast %71 : vector<8xf32> to vector<8x1xf32>
    %73 = tpu.reciprocal %72 {approx = true} : vector<8x1xf32> -> vector<8x1xf32>
    %74 = arith.mulf %72, %73 : vector<8x1xf32>
    %cst_26 = arith.constant 2.000000e+00 : f32
    %75 = vector.broadcast %cst_26 : f32 to vector<8x1xf32>
    %76 = arith.subf %75, %74 : vector<8x1xf32>
    %77 = arith.mulf %73, %76 : vector<8x1xf32>
    %78 = vector.broadcast %77 : vector<8x1xf32> to vector<8x8xf32>
    %79 = arith.mulf %70, %78 : vector<8x8xf32>
    %cst_27 = arith.constant dense<0.000000e+00> : vector<8x8xf32>
    %80 = tpu.matmul %79, %62, %cst_27 {dimension_numbers = #tpu.dot_dimension_numbers<[1], [0], [0], [1], [0, 0, 1, 1], [], []>} : vector<8x8xf32>, vector<8x8xf32>, vector<8x8xf32> -> vector<8x8xf32>
    %c0_28 = arith.constant 0 : index
    %c0_29 = arith.constant 0 : index
    %c16 = arith.constant 16 : index
    %81 = vector.load %arg3[%c0_28, %c0_29, %c16] : memref<1x8x32xf32, #tpu.memory_space<vmem>>, vector<1x8x8xf32>
    %82 = vector.shape_cast %81 : vector<1x8x8xf32> to vector<8x8xf32>
    %83 = vector.shape_cast %80 : vector<8x8xf32> to vector<1x8x8xf32>
    tpu.vector_store %arg3[%c0_28, %c0_29, %c16], %83 {strides = array<i32>} : memref<1x8x32xf32, #tpu.memory_space<vmem>>, vector<1x8x8xf32>,
    %84 = vector.extract_strided_slice %6 {offsets = [0, 24], sizes = [8, 8], strides = [1, 1]} : vector<8x32xf32> to vector<8x8xf32>
    %85 = vector.extract_strided_slice %7 {offsets = [0, 24], sizes = [8, 8], strides = [1, 1]} : vector<8x32xf32> to vector<8x8xf32>
    %86 = vector.extract_strided_slice %8 {offsets = [0, 24], sizes = [8, 8], strides = [1, 1]} : vector<8x32xf32> to vector<8x8xf32>
    %cst_30 = arith.constant dense<0.000000e+00> : vector<8x8xf32>
    %87 = tpu.matmul %84, %85, %cst_30 {dimension_numbers = #tpu.dot_dimension_numbers<[1], [1], [0], [0], [0, 0, 1, 0], [], []>} : vector<8x8xf32>, vector<8x8xf32>, vector<8x8xf32> -> vector<8x8xf32>
    %cst_31 = arith.constant -1.000000e+30 : f32
    %88 = vector.broadcast %cst_31 : f32 to vector<8x8xf32>
    %89 = arith.select %11, %88, %87 : vector<8x8xi1>, vector<8x8xf32>
    %cst_32 = arith.constant dense<0xFF800000> : vector<8xf32>
    %90 = vector.multi_reduction <maximumf>, %89, %cst_32 [1] : vector<8x8xf32> to vector<8xf32>
    %91 = vector.shape_cast %90 : vector<8xf32> to vector<8x1xf32>
    %92 = vector.broadcast %91 : vector<8x1xf32> to vector<8x8xf32>
    %93 = arith.subf %89, %92 : vector<8x8xf32>
    %94 = math.exp %93 : vector<8x8xf32>
    %cst_33 = arith.constant dense<0.000000e+00> : vector<8xf32>
    %95 = vector.multi_reduction <add>, %94, %cst_33 [1] : vector<8x8xf32> to vector<8xf32>
    %96 = vector.shape_cast %95 : vector<8xf32> to vector<8x1xf32>
    %97 = tpu.reciprocal %96 {approx = true} : vector<8x1xf32> -> vector<8x1xf32>
    %98 = arith.mulf %96, %97 : vector<8x1xf32>
    %cst_34 = arith.constant 2.000000e+00 : f32
    %99 = vector.broadcast %cst_34 : f32 to vector<8x1xf32>
    %100 = arith.subf %99, %98 : vector<8x1xf32>
    %101 = arith.mulf %97, %100 : vector<8x1xf32>
    %102 = vector.broadcast %101 : vector<8x1xf32> to vector<8x8xf32>
    %103 = arith.mulf %94, %102 : vector<8x8xf32>
    %cst_35 = arith.constant dense<0.000000e+00> : vector<8x8xf32>
    %104 = tpu.matmul %103, %86, %cst_35 {dimension_numbers = #tpu.dot_dimension_numbers<[1], [0], [0], [1], [0, 0, 1, 1], [], []>} : vector<8x8xf32>, vector<8x8xf32>, vector<8x8xf32> -> vector<8x8xf32>
    %c0_36 = arith.constant 0 : index
    %c0_37 = arith.constant 0 : index
    %c24 = arith.constant 24 : index
    %105 = vector.load %arg3[%c0_36, %c0_37, %c24] : memref<1x8x32xf32, #tpu.memory_space<vmem>>, vector<1x8x8xf32>
    %106 = vector.shape_cast %105 : vector<1x8x8xf32> to vector<8x8xf32>
    %107 = vector.shape_cast %104 : vector<8x8xf32> to vector<1x8x8xf32>
    tpu.vector_store %arg3[%c0_36, %c0_37, %c24], %107 {strides = array<i32>} : memref<1x8x32xf32, #tpu.memory_space<vmem>>, vector<1x8x8xf32>,
    return
  }
  func.func @transform_0(%arg0: i32) -> (i32, i32, i32) {
    %c0_i32 = arith.constant 0 : i32
    %c0_i32_0 = arith.constant 0 : i32
    %c0_i32_1 = arith.constant 0 : i32
    return %arg0, %c0_i32, %c0_i32_0 : i32, i32, i32
  }
  func.func @transform_1(%arg0: i32) -> (i32, i32) {
    %c0_i32 = arith.constant 0 : i32
    %c0_i32_0 = arith.constant 0 : i32
    %c0_i32_1 = arith.constant 0 : i32
    return %c0_i32, %c0_i32_0 : i32, i32
  }
  func.func @transform_2(%arg0: i32) -> (i32, i32, i32) {
    %c0_i32 = arith.constant 0 : i32
    %c0_i32_0 = arith.constant 0 : i32
    %c0_i32_1 = arith.constant 0 : i32
    return %arg0, %c0_i32, %c0_i32_0 : i32, i32, i32
  }
}

</mosaic_0001>

<llo_original>
// kernel: multi_head_attention.1
$region0: #{multi_head_attention.1}
  #allocation0 [shape = 'u32[]', space=smem, size = 0x4, offset = 0x4, fixed_abs, tag = 'smem constant byte address 0x4 - core index']
  #allocation1 [shape = 'u32[72,128]{1,0:T(1,128)}', space=vmem, size = 0x9000, scoped, tag = 'internal scratch']
  %s0 = inlined_call_operand.vmem [shape: f32[2,8,32], index: 0, kind: input, shape index: {}]
  %s1 = inlined_call_operand.vmem [shape: f32[32,96], index: 1, kind: input, shape index: {}]
  %s2 = inlined_call_operand.hbm [shape: f32[2,8,32], index: 2, kind: output, shape index: {}]
  %s3 = sld [smem:[#allocation0]]
  $region41: #{multi_head_attention.1} parent=0
    _
  %s5 = ssub.s32 1, %s3
  %s6 = scalar_select 0, %s5, %s3
  $region1: #{multi_head_attention.1} parent=0
    #allocation2 [shape = 'u8[8192]{0}', space=vmem, size = 0x2000, scoped, tag = 'output window, operand 0']
    #allocation3 [shape = 's32[2]{0}', space=sflag, size = 0x8, scoped, tag = 'scoped memory for multi_head_attention.1']
    %7 = vsyncpa [#allocation3], 0
    %s8 = scalar_lea.sflag [#allocation3], 1
    %9 = vsyncpa %s8, 0
    loop: start=0, step=1, limit=4
    $region2: #{multi_head_attention.1} parent=1 // loop_pre_header
      _
    $region3: #{multi_head_attention.1} parent=1 // loop_header
      %s11 = sphi 0, %s15
      %p12 = scmp.ge.s32.totalorder %s11, 4
      %s21 = sphi 0, %s23
      %s24 = sphi 0, %s21
      %s25 = sphi 0, %s24
      %s41 = sphi 0, %s25
      %s45 = sphi 0, %s45
      %s47 = sphi 0, %s45
      %s48 = sphi 0, %s47
      %s62 = sphi 0, %s48
      %s68 = sphi 0, %s70
      %s71 = sphi 0, %s68
      %s72 = sphi 0, %s71
      %s88 = sphi 0, %s72
    $region4: #{multi_head_attention.1} parent=1 // loop_header_branch
      %14 = sbr.rel (%p12) target = $region8
    $region5: #{multi_head_attention.1} parent=1 // loop_body
      %s16 = ssub.s32 %s11, 1
      %s17 = ssub.s32 %s11, 2
      %s18 = sadd.s32 %s11, 1
      %s19 = ssub.s32 %s11, %s18
      %p20 = scmp.eq.s32.totalorder %s19, 0
      %s22 = sadd.s32 %s21, 1
      %s23 = scalar_select %p20, %s21, %s22
      %p26 = pneg %p20
      %p27 = scmp.eq.s32.totalorder %s11, 1
      %p28 = por %p26, %p27
      %p29 = scmp.ne.s32.totalorder %s21, %s24
      %p30 = scmp.eq.s32.totalorder %s11, 0
      %p31 = por %p29, %p30
      %p32 = scmp.ne.s32.totalorder %s21, %s24
      %p33 = scmp.eq.s32.totalorder %s16, 1
      %p34 = por %p32, %p33
      %p35 = scmp.ne.s32.totalorder %s24, %s25
      %p36 = scmp.eq.s32.totalorder %s16, 0
      %p37 = por %p35, %p36
      %p38 = scmp.ne.s32.totalorder %s24, %s25
      %p39 = scmp.eq.s32.totalorder %s17, 1
      %p40 = por %p38, %p39
      %p42 = scmp.ne.s32.totalorder %s25, %s41
      %p43 = scmp.eq.s32.totalorder %s17, 0
      %p44 = por %p42, %p43
      %s46 = sadd.s32 %s45, 1
      %p49 = scmp.eq.s32.totalorder %s11, 1
      %p50 = scmp.ne.s32.totalorder %s45, %s47
      %p51 = scmp.eq.s32.totalorder %s11, 0
      %p52 = por %p50, %p51
      %p53 = scmp.ne.s32.totalorder %s45, %s47
      %p54 = scmp.eq.s32.totalorder %s16, 1
      %p55 = por %p53, %p54
      %p56 = scmp.ne.s32.totalorder %s47, %s48
      %p57 = scmp.eq.s32.totalorder %s16, 0
      %p58 = por %p56, %p57
      %p59 = scmp.ne.s32.totalorder %s47, %s48
      %p60 = scmp.eq.s32.totalorder %s17, 1
      %p61 = por %p59, %p60
      %p63 = scmp.ne.s32.totalorder %s48, %s62
      %p64 = scmp.eq.s32.totalorder %s17, 0
      %p65 = por %p63, %p64
      %s66 = ssub.s32 %s11, %s18
      %p67 = scmp.eq.s32.totalorder %s66, 0
      %s69 = sadd.s32 %s68, 1
      %s70 = scalar_select %p67, %s68, %s69
      %p73 = pneg %p67
      %p74 = scmp.eq.s32.totalorder %s11, 1
      %p75 = por %p73, %p74
      %p76 = scmp.ne.s32.totalorder %s68, %s71
      %p77 = scmp.eq.s32.totalorder %s11, 0
      %p78 = por %p76, %p77
      %p79 = scmp.ne.s32.totalorder %s68, %s71
      %p80 = scmp.eq.s32.totalorder %s16, 1
      %p81 = por %p79, %p80
      %p82 = scmp.ne.s32.totalorder %s71, %s72
      %p83 = scmp.eq.s32.totalorder %s16, 0
      %p84 = por %p82, %p83
      %p85 = scmp.ne.s32.totalorder %s71, %s72
      %p86 = scmp.eq.s32.totalorder %s17, 1
      %p87 = por %p85, %p86
      %p89 = scmp.ne.s32.totalorder %s72, %s88
      %p90 = scmp.eq.s32.totalorder %s17, 0
      %p91 = por %p89, %p90
      %p92 = scmp.le.s32.totalorder 1, %s11
      %p93 = scmp.lt.s32.totalorder %s11, 3
      %p94 = pnand %p92, %p93
      %p95 = pneg %p94
      // Predicated region
      $region9: #{multi_head_attention.1} parent=5 // pred_check
        _
      $region10: #{multi_head_attention.1} parent=5 // pred_check_branch
        %97 = sbr.rel (%p94) target = $region12
      $region11: #{multi_head_attention.1} parent=5 // pred_region
        %s98 = ssub.s32 %s11, 1
        // Predicated region
        $region13: #{multi_head_attention.1} parent=11 // pred_check
          %p99 = pneg %p58
        $region14: #{multi_head_attention.1} parent=11 // pred_check_branch
          %101 = sbr.rel (%p99) target = $region16
        $region15: #{multi_head_attention.1} parent=11 // pred_region
          _
        $region16: #{multi_head_attention.1} parent=11 // pred_fallthru
          _
      $region12: #{multi_head_attention.1} parent=5 // pred_fallthru
        _
      %p102 = scmp.lt.s32.totalorder %s11, 2
      // Predicated region
      $region17: #{multi_head_attention.1} parent=5 // pred_check
        %p103 = pneg %p102
      $region18: #{multi_head_attention.1} parent=5 // pred_check_branch
        %105 = sbr.rel (%p103) target = $region20
      $region19: #{multi_head_attention.1} parent=5 // pred_region
        // Predicated region
        $region21: #{multi_head_attention.1} parent=19 // pred_check
          %p106 = pneg %p31
        $region22: #{multi_head_attention.1} parent=19 // pred_check_branch
          %108 = sbr.rel (%p106) target = $region24
        $region23: #{multi_head_attention.1} parent=19 // pred_region
          %p109 = scmp.lt.s32.totalorder %s11, 1
          %s110 = scalar_select %p109, %s11, 1
          %s111 = smul.addr %s110, 8
          %s112 = scalar_lea.vmem %s0, %s111
        $region24: #{multi_head_attention.1} parent=19 // pred_fallthru
          _
      $region20: #{multi_head_attention.1} parent=5 // pred_fallthru
        _
      %p113 = scmp.le.s32.totalorder 1, %s11
      %p114 = scmp.lt.s32.totalorder %s11, 3
      %p115 = pnand %p113, %p114
      %p116 = pneg %p115
      // Predicated region
      $region25: #{multi_head_attention.1} parent=5 // pred_check
        _
      $region26: #{multi_head_attention.1} parent=5 // pred_check_branch
        %118 = sbr.rel (%p115) target = $region28
      $region27: #{multi_head_attention.1} parent=5 // pred_region
        %s119 = ssub.s32 %s11, 1
        %p120 = scmp.lt.s32.totalorder %s16, 1
        %s121 = scalar_select %p120, %s16, 1
        %s122 = smul.addr %s121, 8
        %s123 = scalar_lea.vmem %s0, %s122
        %p124 = pneg %p37
        %p125 = pneg %p34
        %p126 = pneg %p58
        %p127 = pneg %p55
        %p128 = pneg %p84
        %p129 = pneg %p81
        %s130 = sand.u32 %s71, 1
        %s131 = scalar_lea.sflag [#allocation3], %s130
        %s132 = sand.u32 %s71, 1
        %s133 = smul.addr %s132, 8
        %s134 = scalar_lea.vmem [#allocation2], %s133
        %p135 = scmp.lt.s32.totalorder %s16, 1
        %s136 = scalar_select %p135, %s16, 1
        %s137 = smul.addr %s136, 8
        %s138 = scalar_lea.vmem %s0, %s137
        %v139 = vld [vmem:[%s138] sm:$0xff]
        %v140 = vld [vmem:[%s1] sm:$0xff]
        %v141 = vld [vmem:[%s1 + $0x8] sm:$0xff]
        %v142 = vld [vmem:[%s1 + $0x10] sm:$0xff]
        %v143 = vld [vmem:[%s1 + $0x18] sm:$0xff]
        %vm144 = vcmask 261120
        %v146 = vsel %vm144, %v139, 0
        %148 = vmatpush.msra.mxu0 0.0
        %149 = vmatpush.msra.mxu0 0.0
        %150 = vmatpush.msra.mxu0 0.0
        %151 = vmatpush.msra.mxu0 0.0
        %152 = vmatpush.msra.mxu0 0.0
        %153 = vmatpush.msra.mxu0 0.0
        %154 = vmatpush.msra.mxu0 0.0
        %155 = vmatpush.msra.mxu0 0.0
        %156 = vmatpush.msra.mxu0 0.0
        %157 = vmatpush.msra.mxu0 0.0
        %158 = vmatpush.msra.mxu0 0.0
        %159 = vmatpush.msra.mxu0 0.0
        %160 = vmatpush.msra.mxu0 %v143
        %161 = vmatpush.msra.mxu0 %v142
        %162 = vmatpush.msra.mxu0 %v141
        %163 = vmatpush.msra.mxu0 %v140
        %164 = vmatmul.f32.gmra.mxu0 %v146
        %v165 = vpop.f32.mrf.mxu0
        %v166 = vadd.f32 0.0, %v165
        %167 = vdwg.mxu0
        %v168 = vmul.f32 %v166, 0.35355338
        %v169 = vlaneseq
        %v170 = vshrl.u32 %v169, 7
        %v171 = vlaneseq
        %v172 = vand.u32 %v171, 127
        %vm173 = vcmp.gt.s32.totalorder %v172, %v170
        %175 = vrot.lane.b32.xlu0 %v166, 96
        %v176 = vpop.permute.xlu0 %175
        %vm177 = vcmask 64512
        %v179 = vsel %vm177, %v168, 0
        %v181 = vsel %vm177, %v176, 0
        %183 = vmatpush.xpose.msra.mxu0 0.0
        %184 = vmatpush.xpose.msra.mxu0 0.0
        %185 = vmatpush.xpose.msra.mxu0 0.0
        %186 = vmatpush.xpose.msra.mxu0 0.0
        %187 = vmatpush.xpose.msra.mxu0 0.0
        %188 = vmatpush.xpose.msra.mxu0 0.0
        %189 = vmatpush.xpose.msra.mxu0 0.0
        %190 = vmatpush.xpose.msra.mxu0 0.0
        %191 = vmatpush.xpose.msra.mxu0 0.0
        %192 = vmatpush.xpose.msra.mxu0 0.0
        %193 = vmatpush.xpose.msra.mxu0 0.0
        %194 = vmatpush.xpose.msra.mxu0 0.0
        %195 = vmatpush.xpose.msra.mxu0 0.0
        %196 = vmatpush.xpose.msra.mxu0 0.0
        %197 = vmatpush.xpose.msra.mxu0 0.0
        %198 = vmatpush.xpose.msra.mxu0 %v181
        %199 = vmatmul.f32.gmra.mxu0 %v179
        %v200 = vpop.f32.mrf.mxu0
        %v201 = vadd.f32 0.0, %v200
        %202 = vdwg.mxu0
        %v203 = vsel %vm173, -1e+30, %v201
        %v204 = vsel %vm177, %v203, -inf
        %205 = vmax.xlane.f32.xlu0 %v204
        %v206 = vpop.xlane.xlu0 %205
        %v207 = vsub.f32 %v203, %v206
        %v208 = vmul.f32 %v207, 1.442695
        %v209 = vpow.pop %v208
        %v210 = vsel %vm177, %v209, 0.0
        %211 = vadd.xlane.f32.xlu0 %v210
        %v212 = vpop.xlane.xlu0 %211
        %v213 = vrcp.pop %v212
        %v214 = vmul.f32 %v212, %v213
        %v215 = vsub.f32 2.0, %v214
        %v216 = vmul.f32 %v213, %v215
        %v217 = vmul.f32 %v209, %v216
        %218 = vrot.lane.b32.xlu0 %v166, 64
        %v219 = vpop.permute.xlu0 %218
        %v222 = vsel %vm177, %v217, 0
        %224 = vmatpush.msra.mxu0 0.0
        %225 = vmatpush.msra.mxu0 0.0
        %226 = vmatpush.msra.mxu0 0.0
        %227 = vmatpush.msra.mxu0 0.0
        %228 = vmatpush.msra.mxu0 0.0
        %229 = vmatpush.msra.mxu0 0.0
        %230 = vmatpush.msra.mxu0 0.0
        %231 = vmatpush.msra.mxu0 0.0
        %232 = vmatpush.msra.mxu0 0.0
        %233 = vmatpush.msra.mxu0 0.0
        %234 = vmatpush.msra.mxu0 0.0
        %235 = vmatpush.msra.mxu0 0.0
        %236 = vmatpush.msra.mxu0 0.0
        %237 = vmatpush.msra.mxu0 0.0
        %238 = vmatpush.msra.mxu0 0.0
        %239 = vmatpush.msra.mxu0 %v219
        %240 = vmatmul.f32.gmra.mxu0 %v222
        %v241 = vpop.f32.mrf.mxu0
        %v242 = vadd.f32 0.0, %v241
        %243 = vdwg.mxu0
        %244 = vst.msk [vmem:[%s134] sm:$0xff] %vm177, %v242
        %245 = vrot.lane.b32.xlu0 %v168, 120
        %v246 = vpop.permute.xlu0 %245
        %247 = vrot.lane.b32.xlu0 %v166, 88
        %v248 = vpop.permute.xlu0 %247
        %v249 = vsel %vm177, %v246, 0
        %v251 = vsel %vm177, %v248, 0
        %253 = vmatpush.xpose.msra.mxu0 0.0
        %254 = vmatpush.xpose.msra.mxu0 0.0
        %255 = vmatpush.xpose.msra.mxu0 0.0
        %256 = vmatpush.xpose.msra.mxu0 0.0
        %257 = vmatpush.xpose.msra.mxu0 0.0
        %258 = vmatpush.xpose.msra.mxu0 0.0
        %259 = vmatpush.xpose.msra.mxu0 0.0
        %260 = vmatpush.xpose.msra.mxu0 0.0
        %261 = vmatpush.xpose.msra.mxu0 0.0
        %262 = vmatpush.xpose.msra.mxu0 0.0
        %263 = vmatpush.xpose.msra.mxu0 0.0
        %264 = vmatpush.xpose.msra.mxu0 0.0
        %265 = vmatpush.xpose.msra.mxu0 0.0
        %266 = vmatpush.xpose.msra.mxu0 0.0
        %267 = vmatpush.xpose.msra.mxu0 0.0
        %268 = vmatpush.xpose.msra.mxu0 %v251
        %269 = vmatmul.f32.gmra.mxu0 %v249
        %v270 = vpop.f32.mrf.mxu0
        %v271 = vadd.f32 0.0, %v270
        %272 = vdwg.mxu0
        %v273 = vsel %vm173, -1e+30, %v271
        %v274 = vsel %vm177, %v273, -inf
        %275 = vmax.xlane.f32.xlu0 %v274
        %v276 = vpop.xlane.xlu0 %275
        %v277 = vsub.f32 %v273, %v276
        %v278 = vmul.f32 %v277, 1.442695
        %v279 = vpow.pop %v278
        %v280 = vsel %vm177, %v279, 0.0
        %281 = vadd.xlane.f32.xlu0 %v280
        %v282 = vpop.xlane.xlu0 %281
        %v283 = vrcp.pop %v282
        %v284 = vmul.f32 %v282, %v283
        %v285 = vsub.f32 2.0, %v284
        %v286 = vmul.f32 %v283, %v285
        %v287 = vmul.f32 %v279, %v286
        %288 = vrot.lane.b32.xlu0 %v166, 56
        %v289 = vpop.permute.xlu0 %288
        %v292 = vsel %vm177, %v287, 0
        %294 = vmatpush.msra.mxu0 0.0
        %295 = vmatpush.msra.mxu0 0.0
        %296 = vmatpush.msra.mxu0 0.0
        %297 = vmatpush.msra.mxu0 0.0
        %298 = vmatpush.msra.mxu0 0.0
        %299 = vmatpush.msra.mxu0 0.0
        %300 = vmatpush.msra.mxu0 0.0
        %301 = vmatpush.msra.mxu0 0.0
        %302 = vmatpush.msra.mxu0 0.0
        %303 = vmatpush.msra.mxu0 0.0
        %304 = vmatpush.msra.mxu0 0.0
        %305 = vmatpush.msra.mxu0 0.0
        %306 = vmatpush.msra.mxu0 0.0
        %307 = vmatpush.msra.mxu0 0.0
        %308 = vmatpush.msra.mxu0 0.0
        %309 = vmatpush.msra.mxu0 %v289
        %310 = vmatmul.f32.gmra.mxu0 %v292
        %v311 = vpop.f32.mrf.mxu0
        %v312 = vadd.f32 0.0, %v311
        %313 = vdwg.mxu0
        %315 = vrot.lane.b32.xlu0 %v312, 8
        %v316 = vpop.permute.xlu0 %315
        %vm318 = vcmask 130112
        %319 = vst.msk [vmem:[%s134] sm:$0xff] %vm318, %v316
        %320 = vrot.lane.b32.xlu0 %v168, 112
        %v321 = vpop.permute.xlu0 %320
        %322 = vrot.lane.b32.xlu0 %v166, 80
        %v323 = vpop.permute.xlu0 %322
        %v324 = vsel %vm177, %v321, 0
        %v326 = vsel %vm177, %v323, 0
        %328 = vmatpush.xpose.msra.mxu0 0.0
        %329 = vmatpush.xpose.msra.mxu0 0.0
        %330 = vmatpush.xpose.msra.mxu0 0.0
        %331 = vmatpush.xpose.msra.mxu0 0.0
        %332 = vmatpush.xpose.msra.mxu0 0.0
        %333 = vmatpush.xpose.msra.mxu0 0.0
        %334 = vmatpush.xpose.msra.mxu0 0.0
        %335 = vmatpush.xpose.msra.mxu0 0.0
        %336 = vmatpush.xpose.msra.mxu0 0.0
        %337 = vmatpush.xpose.msra.mxu0 0.0
        %338 = vmatpush.xpose.msra.mxu0 0.0
        %339 = vmatpush.xpose.msra.mxu0 0.0
        %340 = vmatpush.xpose.msra.mxu0 0.0
        %341 = vmatpush.xpose.msra.mxu0 0.0
        %342 = vmatpush.xpose.msra.mxu0 0.0
        %343 = vmatpush.xpose.msra.mxu0 %v326
        %344 = vmatmul.f32.gmra.mxu0 %v324
        %v345 = vpop.f32.mrf.mxu0
        %v346 = vadd.f32 0.0, %v345
        %347 = vdwg.mxu0
        %v348 = vsel %vm173, -1e+30, %v346
        %v349 = vsel %vm177, %v348, -inf
        %350 = vmax.xlane.f32.xlu0 %v349
        %v351 = vpop.xlane.xlu0 %350
        %v352 = vsub.f32 %v348, %v351
        %v353 = vmul.f32 %v352, 1.442695
        %v354 = vpow.pop %v353
        %v355 = vsel %vm177, %v354, 0.0
        %356 = vadd.xlane.f32.xlu0 %v355
        %v357 = vpop.xlane.xlu0 %356
        %v358 = vrcp.pop %v357
        %v359 = vmul.f32 %v357, %v358
        %v360 = vsub.f32 2.0, %v359
        %v361 = vmul.f32 %v358, %v360
        %v362 = vmul.f32 %v354, %v361
        %363 = vrot.lane.b32.xlu0 %v166, 48
        %v364 = vpop.permute.xlu0 %363
        %v367 = vsel %vm177, %v362, 0
        %369 = vmatpush.msra.mxu0 0.0
        %370 = vmatpush.msra.mxu0 0.0
        %371 = vmatpush.msra.mxu0 0.0
        %372 = vmatpush.msra.mxu0 0.0
        %373 = vmatpush.msra.mxu0 0.0
        %374 = vmatpush.msra.mxu0 0.0
        %375 = vmatpush.msra.mxu0 0.0
        %376 = vmatpush.msra.mxu0 0.0
        %377 = vmatpush.msra.mxu0 0.0
        %378 = vmatpush.msra.mxu0 0.0
        %379 = vmatpush.msra.mxu0 0.0
        %380 = vmatpush.msra.mxu0 0.0
        %381 = vmatpush.msra.mxu0 0.0
        %382 = vmatpush.msra.mxu0 0.0
        %383 = vmatpush.msra.mxu0 0.0
        %384 = vmatpush.msra.mxu0 %v364
        %385 = vmatmul.f32.gmra.mxu0 %v367
        %v386 = vpop.f32.mrf.mxu0
        %v387 = vadd.f32 0.0, %v386
        %388 = vdwg.mxu0
        %390 = vrot.lane.b32.xlu0 %v387, 16
        %v391 = vpop.permute.xlu0 %390
        %vm393 = vcmask 195712
        %394 = vst.msk [vmem:[%s134] sm:$0xff] %vm393, %v391
        %395 = vrot.lane.b32.xlu0 %v168, 104
        %v396 = vpop.permute.xlu0 %395
        %397 = vrot.lane.b32.xlu0 %v166, 72
        %v398 = vpop.permute.xlu0 %397
        %v399 = vsel %vm177, %v396, 0
        %v401 = vsel %vm177, %v398, 0
        %403 = vmatpush.xpose.msra.mxu0 0.0
        %404 = vmatpush.xpose.msra.mxu0 0.0
        %405 = vmatpush.xpose.msra.mxu0 0.0
        %406 = vmatpush.xpose.msra.mxu0 0.0
        %407 = vmatpush.xpose.msra.mxu0 0.0
        %408 = vmatpush.xpose.msra.mxu0 0.0
        %409 = vmatpush.xpose.msra.mxu0 0.0
        %410 = vmatpush.xpose.msra.mxu0 0.0
        %411 = vmatpush.xpose.msra.mxu0 0.0
        %412 = vmatpush.xpose.msra.mxu0 0.0
        %413 = vmatpush.xpose.msra.mxu0 0.0
        %414 = vmatpush.xpose.msra.mxu0 0.0
        %415 = vmatpush.xpose.msra.mxu0 0.0
        %416 = vmatpush.xpose.msra.mxu0 0.0
        %417 = vmatpush.xpose.msra.mxu0 0.0
        %418 = vmatpush.xpose.msra.mxu0 %v401
        %419 = vmatmul.f32.gmra.mxu0 %v399
        %v420 = vpop.f32.mrf.mxu0
        %v421 = vadd.f32 0.0, %v420
        %422 = vdwg.mxu0
        %v423 = vsel %vm173, -1e+30, %v421
        %v424 = vsel %vm177, %v423, -inf
        %425 = vmax.xlane.f32.xlu0 %v424
        %v426 = vpop.xlane.xlu0 %425
        %v427 = vsub.f32 %v423, %v426
        %v428 = vmul.f32 %v427, 1.442695
        %v429 = vpow.pop %v428
        %v430 = vsel %vm177, %v429, 0.0
        %431 = vadd.xlane.f32.xlu0 %v430
        %v432 = vpop.xlane.xlu0 %431
        %v433 = vrcp.pop %v432
        %v434 = vmul.f32 %v432, %v433
        %v435 = vsub.f32 2.0, %v434
        %v436 = vmul.f32 %v433, %v435
        %v437 = vmul.f32 %v429, %v436
        %438 = vrot.lane.b32.xlu0 %v166, 40
        %v439 = vpop.permute.xlu0 %438
        %v442 = vsel %vm177, %v437, 0
        %444 = vmatpush.msra.mxu0 0.0
        %445 = vmatpush.msra.mxu0 0.0
        %446 = vmatpush.msra.mxu0 0.0
        %447 = vmatpush.msra.mxu0 0.0
        %448 = vmatpush.msra.mxu0 0.0
        %449 = vmatpush.msra.mxu0 0.0
        %450 = vmatpush.msra.mxu0 0.0
        %451 = vmatpush.msra.mxu0 0.0
        %452 = vmatpush.msra.mxu0 0.0
        %453 = vmatpush.msra.mxu0 0.0
        %454 = vmatpush.msra.mxu0 0.0
        %455 = vmatpush.msra.mxu0 0.0
        %456 = vmatpush.msra.mxu0 0.0
        %457 = vmatpush.msra.mxu0 0.0
        %458 = vmatpush.msra.mxu0 0.0
        %459 = vmatpush.msra.mxu0 %v439
        %460 = vmatmul.f32.gmra.mxu0 %v442
        %v461 = vpop.f32.mrf.mxu0
        %v462 = vadd.f32 0.0, %v461
        %463 = vdwg.mxu0
        %465 = vrot.lane.b32.xlu0 %v462, 24
        %v466 = vpop.permute.xlu0 %465
        %vm468 = vcmask 261312
        %469 = vst.msk [vmem:[%s134] sm:$0xff] %vm468, %v466
        %s470 = sand.u32 %s71, 1
        %s471 = scalar_lea.sflag [#allocation3], %s470
        %s472 = sand.u32 %s71, 1
        %s473 = smul.addr %s472, 8
        %s474 = scalar_lea.vmem [#allocation2], %s473
        // Predicated region
        $region29: #{multi_head_attention.1} parent=27 // pred_check
          %p475 = pneg %p81
        $region30: #{multi_head_attention.1} parent=27 // pred_check_branch
          %477 = sbr.rel (%p475) target = $region32
        $region31: #{multi_head_attention.1} parent=27 // pred_region
          %479 = vsyncadd %s471, 0
          %s480 = smul.addr %s16, 8
          %s481 = scalar_lea.hbm %s2, %s480
          %s483 = sshll.u32 %s474, 4
          %s484 = int_to_ptr.vmem [resolvable:$true] %s483
          %s485 = sshll.u32 %s481, 4
          %s486 = int_to_ptr.hbm [resolvable:$true] %s485
          %488 = dma.vmem_to_hbm [thread:$0]  %s484, 128, %s486, %s471
        $region32: #{multi_head_attention.1} parent=27 // pred_fallthru
          _
      $region28: #{multi_head_attention.1} parent=5 // pred_fallthru
        _
      %p489 = scmp.le.s32.totalorder 2, %s11
      // Predicated region
      $region33: #{multi_head_attention.1} parent=5 // pred_check
        %p490 = pneg %p489
      $region34: #{multi_head_attention.1} parent=5 // pred_check_branch
        %492 = sbr.rel (%p490) target = $region36
      $region35: #{multi_head_attention.1} parent=5 // pred_region
        %s493 = ssub.s32 %s11, 2
        // Predicated region
        $region37: #{multi_head_attention.1} parent=35 // pred_check
          %p494 = pneg %p87
        $region38: #{multi_head_attention.1} parent=35 // pred_check_branch
          %496 = sbr.rel (%p494) target = $region40
        $region39: #{multi_head_attention.1} parent=35 // pred_region
          %s497 = sand.u32 %s72, 1
          %s498 = scalar_lea.sflag [#allocation3], %s497
          %s499 = sand.u32 %s72, 1
          %s500 = smul.addr %s499, 8
          %s501 = scalar_lea.vmem [#allocation2], %s500
          %503 = dma.done %s498, 128
        $region40: #{multi_head_attention.1} parent=35 // pred_fallthru
          _
      $region36: #{multi_head_attention.1} parent=5 // pred_fallthru
        _
    $region6: #{multi_head_attention.1} parent=1 // loop_footer
      %s15 = sadd.s32 1, %s11
    $region7: #{multi_head_attention.1} parent=1 // loop_footer_branch
      %10 = sbr.rel target = $region3
    $region8: #{multi_head_attention.1} parent=1 // loop_exit
      _
    %504 = vsyncpa [#allocation3], 1
    %s505 = scalar_lea.sflag [#allocation3], 1
    %506 = vsyncpa %s505, 1

</llo_original>
